<compile_context>
chip_gen: v7x
topology: tpu7x:2x2x1
jax: 0.10.0
libtpu: 0.0.40
codegen_flags: <defaults>
</compile_context>

<pallas_src>
import functools

import jax
import jax.numpy as jnp
from jax.experimental import pallas as pl
from jax.experimental.pallas import tpu as pltpu

_LANE = 128


def _channel_attention_kernel(x_ref, w1t_ref, alpha_ref, w2t_ref, out_ref,
                              sum_part, max_part, *, hw_true, tile_hw, acc_w,
                              num_slabs, inv_hw, needs_mask):
    """One (batch-tile, spatial-tile) grid step.

    x_ref:     (tile_n, C, tile_hw)   native-dtype spatial slice of the input
    w1t_ref:   (C, hidden)            fc1 weight, transposed (1x1 conv == matmul)
    alpha_ref: (1, hidden)            PReLU per-channel slope
    w2t_ref:   (hidden, C)            fc2 weight, transposed
    out_ref:   (tile_n, 1, C)         sigmoid(channel-attention logits)
    sum_part:  (tile_n, C, acc_w) f32 per-lane partial sums   (VMEM scratch)
    max_part:  (tile_n, C, acc_w)     per-lane partial maxima (VMEM scratch)
    """
    hw_idx = pl.program_id(1)
    n_hw = pl.num_programs(1)
    last = n_hw - 1

    @pl.when(hw_idx == 0)
    def _init():
        sum_part[...] = jnp.zeros_like(sum_part)
        max_part[...] = jnp.full_like(max_part, -jnp.inf)

    def accumulate(masked):
        # Pure-VPU per-lane accumulation over static 128-lane slabs; the
        # cross-lane (XLU) reduction is deferred to the epilogue.
        if masked:
            lane = jax.lax.broadcasted_iota(jnp.int32, (1, 1, acc_w), 2)
            base = hw_idx * tile_hw
        for j in range(num_slabs):                       # static, unrolled
            slab = x_ref[:, :, j * acc_w:(j + 1) * acc_w]
            s_sum = slab.astype(jnp.float32)
            s_max = slab.astype(max_part.dtype)
            if masked:
                # OOB lanes of the partial final block are undefined -> mask
                # BOTH paths (0 for sum, -inf for max) on this step only.
                valid = (base + j * acc_w + lane) < hw_true
                s_sum = jnp.where(valid, s_sum, 0.0)
                s_max = jnp.where(valid, s_max, float("-inf"))
            sum_part[...] += s_sum
            max_part[...] = jnp.maximum(max_part[...], s_max)

    if needs_mask:
        @pl.when(hw_idx < last)
        def _interior():          # hot path: no masking work at all
            accumulate(masked=False)

        @pl.when(hw_idx == last)
        def _ragged_tail():       # masking cost paid once per batch tile
            accumulate(masked=True)
    else:
        accumulate(masked=False)

    @pl.when(hw_idx == last)
    def _finalize():
        # Single XLU lane-reduce of each accumulator, then the tiny fused MLP.
        avg = jnp.sum(sum_part[...], axis=-1) * inv_hw                # (tn, C) f32
        mx = jnp.max(max_part[...], axis=-1).astype(jnp.float32)      # (tn, C) f32
        pooled = jnp.concatenate([avg, mx], axis=0)                   # (2*tn, C)
        h = jnp.dot(pooled, w1t_ref[...],
                    preferred_element_type=jnp.float32)               # (2*tn, hidden)
        alpha = alpha_ref[...]                                        # (1, hidden)
        h = jnp.where(h >= 0, h, alpha * h)                           # PReLU
        o = jnp.dot(h, w2t_ref[...],
                    preferred_element_type=jnp.float32)               # (2*tn, C)
        tn = sum_part.shape[0]
        logits = o[:tn] + o[tn:]                                      # avg + max paths
        out_ref[:, 0, :] = jax.nn.sigmoid(logits).astype(out_ref.dtype)


def channel_attention_maxpool(x, fc1_w, prelu_alpha, fc2_w, *,
                              target_block_bytes=4 * 1024 * 1024):
    """x: (N, C, H, W) NCHW. fc1_w: (hidden, C, 1, 1). prelu_alpha: (hidden,).
    fc2_w: (C, hidden, 1, 1). Returns (N, C, 1, 1) sigmoid attention weights."""
    N, C, H, W = x.shape
    hidden = fc1_w.shape[0]
    HW = H * W

    # Stream x in its native dtype; merging trailing dims is a free reshape.
    x_flat = x.reshape(N, C, HW)
    w1t = fc1_w.reshape(hidden, C).T.astype(jnp.float32)   # (C, hidden)
    w2t = fc2_w.reshape(C, hidden).T.astype(jnp.float32)   # (hidden, C)
    alpha = prelu_alpha.reshape(1, hidden).astype(jnp.float32)

    # ---- batch tiling: prefer 8-row (sublane) tiles, but guarantee >= 2 grid
    # steps on the "parallel" axis whenever N >= 2 so both v7x TCs stream.
    if N >= 16 and N % 8 == 0:
        tile_n = 8
    else:
        tile_n = N
        for t in (8, 4, 2, 1):
            if t < N and N % t == 0:
                tile_n = t
                break
    num_n = N // tile_n

    # ---- spatial tiling: lane-aligned blocks of ~target_block_bytes (capped so
    # the static slab loop stays short); no wrapper-side padding of x.
    dtype_bytes = jnp.dtype(x.dtype).itemsize
    max_slabs = 64
    if HW >= _LANE:
        max_tile = (HW // _LANE) * _LANE
        budget = (target_block_bytes // (tile_n * C * dtype_bytes)) // _LANE * _LANE
        budget = min(budget, max_slabs * _LANE)
        tile_hw = max(_LANE, min(budget, max_tile))
        acc_w = _LANE
    else:
        tile_hw = HW           # tiny images: one full-extent block, no mask
        acc_w = HW
    num_hw = pl.cdiv(HW, tile_hw)
    num_slabs = tile_hw // acc_w
    needs_mask = (HW % tile_hw) != 0      # ragged tail handled in-kernel

    # Max accumulates exactly in bf16 (less VPU width / vreg traffic on
    # bf16-VPU chips); sums are always accumulated in f32.
    max_dtype = jnp.bfloat16 if x.dtype == jnp.bfloat16 else jnp.float32

    kernel = functools.partial(
        _channel_attention_kernel,
        hw_true=HW, tile_hw=tile_hw, acc_w=acc_w, num_slabs=num_slabs,
        inv_hw=1.0 / HW, needs_mask=needs_mask)

    # Advisory cost hint: an HBM streamer with a tiny MLP tail.
    flops = 2 * N * C * HW + 2 * (2 * N) * C * hidden * 2
    bytes_accessed = (x_flat.size * dtype_bytes
                      + (w1t.size + w2t.size + alpha.size) * 4
                      + N * C * dtype_bytes)

    out = pl.pallas_call(
        kernel,
        out_shape=jax.ShapeDtypeStruct((N, 1, C), x.dtype),
        grid_spec=pltpu.PrefetchScalarGridSpec(
            num_scalar_prefetch=0,
            grid=(num_n, num_hw),                 # reduction (spatial) axis last
            in_specs=[
                pl.BlockSpec((tile_n, C, tile_hw), lambda n, h: (n, 0, h)),
                pl.BlockSpec((C, hidden), lambda n, h: (0, 0)),
                pl.BlockSpec((1, hidden), lambda n, h: (0, 0)),
                pl.BlockSpec((hidden, C), lambda n, h: (0, 0)),
            ],
            out_specs=pl.BlockSpec((tile_n, 1, C), lambda n, h: (n, 0, 0)),
            scratch_shapes=[
                pltpu.VMEM((tile_n, C, acc_w), jnp.float32),  # per-lane sums
                pltpu.VMEM((tile_n, C, acc_w), max_dtype),    # per-lane maxima
            ],
        ),
        compiler_params=pltpu.CompilerParams(
            dimension_semantics=("parallel", "arbitrary"),
            vmem_limit_bytes=32 * 1024 * 1024),
        cost_estimate=pl.CostEstimate(
            flops=flops, transcendentals=N * C, bytes_accessed=bytes_accessed),
    )(x_flat, w1t, alpha, w2t)

    return out.reshape(N, C, 1, 1)


if __name__ == "__main__":
    # Shapes consistent with the module: in_planes=64, ratio=16 -> hidden=4.
    N, C, ratio = 2, 64, 16
    hidden = C // ratio

    key = jax.random.PRNGKey(0)
    kx1, kx2, k1, k2 = jax.random.split(key, 4)

    # Conv2d weights are (out, in, 1, 1); no bias in the module.
    fc1_w = jax.random.normal(k1, (hidden, C, 1, 1), dtype=jnp.float32) * 0.1
    fc2_w = jax.random.normal(k2, (C, hidden, 1, 1), dtype=jnp.float32) * 0.1
    # PyTorch PReLU default init: 0.25 per channel.
    prelu_alpha = jnp.full((hidden,), 0.25, dtype=jnp.float32)

    def ref(x):
        avg = jnp.mean(x, axis=(2, 3))                    # (N, C)
        mx = jnp.max(x, axis=(2, 3))                      # (N, C)
        w1 = fc1_w.reshape(hidden, C)
        w2 = fc2_w.reshape(C, hidden)

        def mlp(p):
            h = p @ w1.T
            h = jnp.where(h >= 0, h, prelu_alpha[None, :] * h)
            return h @ w2.T

        return jax.nn.sigmoid(mlp(avg) + mlp(mx)).reshape(x.shape[0], C, 1, 1)

    # Case 1: lane-aligned spatial extent (16x16 -> HW=256, single spatial step).
    x1 = jax.random.normal(kx1, (N, C, 16, 16), dtype=jnp.float32)
    out1 = channel_attention_maxpool(x1, fc1_w, prelu_alpha, fc2_w)
    jax.block_until_ready(out1)
    assert out1.shape == (N, C, 1, 1)
    assert jnp.allclose(out1, ref(x1), atol=1e-5, rtol=1e-5)

    # Case 2: ragged spatial extent (13x13 -> HW=169): multiple spatial grid
    # steps over the UNPADDED array with a partial final block, masked in-kernel.
    x2 = jax.random.normal(kx2, (N, C, 13, 13), dtype=jnp.float32)
    out2 = channel_attention_maxpool(x2, fc1_w, prelu_alpha, fc2_w)
    jax.block_until_ready(out2)
    assert out2.shape == (N, C, 1, 1)
    assert jnp.allclose(out2, ref(x2), atol=1e-5, rtol=1e-5)

    print("KERNEL_OK")
</pallas_src>

<mosaic_0001>
module attributes {stable_mosaic.version = 11 : i64} {
  func.func @_channel_attention_kernel(%arg0: i32, %arg1: i32, %arg2: memref<1x64x256xf32, #tpu.memory_space<vmem>>, %arg3: memref<64x4xf32, #tpu.memory_space<vmem>>, %arg4: memref<1x4xf32, #tpu.memory_space<vmem>>, %arg5: memref<4x64xf32, #tpu.memory_space<vmem>>, %arg6: memref<1x1x64xf32, #tpu.memory_space<vmem>>, %arg7: memref<1x64x128xf32, #tpu.memory_space<vmem>>, %arg8: memref<1x64x128xf32, #tpu.memory_space<vmem>>) attributes {dimension_semantics = [#tpu.dimension_semantics<parallel>, #tpu.dimension_semantics<arbitrary>], iteration_bounds = array<i64: 2, 1>, scalar_prefetch = 0 : i64, scratch_operands = 2 : i64, tpu.core_type = #tpu.core_type<tc>, window_params = [{transform_indices = @transform_0, window_bounds = array<i64: 1, 64, 256>}, {pipeline_mode = #tpu.pipeline_mode<synchronous>, transform_indices = @transform_1, window_bounds = array<i64: 64, 4>}, {pipeline_mode = #tpu.pipeline_mode<synchronous>, transform_indices = @transform_2, window_bounds = array<i64: 1, 4>}, {pipeline_mode = #tpu.pipeline_mode<synchronous>, transform_indices = @transform_3, window_bounds = array<i64: 4, 64>}, {transform_indices = @transform_4, window_bounds = array<i64: 1, 1, 64>}]} {
    %c0_i32 = arith.constant 0 : i32
    %0 = arith.cmpi eq, %arg1, %c0_i32 : i32
    %1 = arith.extui %0 : i1 to i32
    %c0_i32_0 = arith.constant 0 : i32
    %2 = arith.cmpi ne, %1, %c0_i32_0 : i32
    scf.if %2 {
      %cst = arith.constant 0.000000e+00 : f32
      %20 = vector.broadcast %cst : f32 to vector<1x64x128xf32>
      %c0_31 = arith.constant 0 : index
      %c0_32 = arith.constant 0 : index
      %c0_33 = arith.constant 0 : index
      %21 = vector.load %arg7[%c0_31, %c0_32, %c0_33] : memref<1x64x128xf32, #tpu.memory_space<vmem>>, vector<1x64x128xf32>
      tpu.vector_store %arg7[%c0_31, %c0_32, %c0_33], %20 {strides = array<i32>} : memref<1x64x128xf32, #tpu.memory_space<vmem>>, vector<1x64x128xf32>,
      %cst_34 = arith.constant 0xFF800000 : f32
      %22 = vector.broadcast %cst_34 : f32 to vector<1x64x128xf32>
      %c0_35 = arith.constant 0 : index
      %c0_36 = arith.constant 0 : index
      %c0_37 = arith.constant 0 : index
      %23 = vector.load %arg8[%c0_35, %c0_36, %c0_37] : memref<1x64x128xf32, #tpu.memory_space<vmem>>, vector<1x64x128xf32>
      tpu.vector_store %arg8[%c0_35, %c0_36, %c0_37], %22 {strides = array<i32>} : memref<1x64x128xf32, #tpu.memory_space<vmem>>, vector<1x64x128xf32>,
    } else {
    }
    %c0 = arith.constant 0 : index
    %c0_1 = arith.constant 0 : index
    %c0_2 = arith.constant 0 : index
    %3 = vector.load %arg2[%c0, %c0_1, %c0_2] : memref<1x64x256xf32, #tpu.memory_space<vmem>>, vector<1x64x128xf32>
    %c0_3 = arith.constant 0 : index
    %c0_4 = arith.constant 0 : index
    %c0_5 = arith.constant 0 : index
    %4 = vector.load %arg7[%c0_3, %c0_4, %c0_5] : memref<1x64x128xf32, #tpu.memory_space<vmem>>, vector<1x64x128xf32>
    %5 = arith.addf %4, %3 : vector<1x64x128xf32>
    %c0_6 = arith.constant 0 : index
    %c0_7 = arith.constant 0 : index
    %c0_8 = arith.constant 0 : index
    %6 = vector.load %arg7[%c0_6, %c0_7, %c0_8] : memref<1x64x128xf32, #tpu.memory_space<vmem>>, vector<1x64x128xf32>
    tpu.vector_store %arg7[%c0_6, %c0_7, %c0_8], %5 {strides = array<i32>} : memref<1x64x128xf32, #tpu.memory_space<vmem>>, vector<1x64x128xf32>,
    %c0_9 = arith.constant 0 : index
    %c0_10 = arith.constant 0 : index
    %c0_11 = arith.constant 0 : index
    %7 = vector.load %arg8[%c0_9, %c0_10, %c0_11] : memref<1x64x128xf32, #tpu.memory_space<vmem>>, vector<1x64x128xf32>
    %8 = arith.maximumf %7, %3 : vector<1x64x128xf32>
    %c0_12 = arith.constant 0 : index
    %c0_13 = arith.constant 0 : index
    %c0_14 = arith.constant 0 : index
    %9 = vector.load %arg8[%c0_12, %c0_13, %c0_14] : memref<1x64x128xf32, #tpu.memory_space<vmem>>, vector<1x64x128xf32>
    tpu.vector_store %arg8[%c0_12, %c0_13, %c0_14], %8 {strides = array<i32>} : memref<1x64x128xf32, #tpu.memory_space<vmem>>, vector<1x64x128xf32>,
    %c0_15 = arith.constant 0 : index
    %c0_16 = arith.constant 0 : index
    %c128 = arith.constant 128 : index
    %10 = vector.load %arg2[%c0_15, %c0_16, %c128] : memref<1x64x256xf32, #tpu.memory_space<vmem>>, vector<1x64x128xf32>
    %c0_17 = arith.constant 0 : index
    %c0_18 = arith.constant 0 : index
    %c0_19 = arith.constant 0 : index
    %11 = vector.load %arg7[%c0_17, %c0_18, %c0_19] : memref<1x64x128xf32, #tpu.memory_space<vmem>>, vector<1x64x128xf32>
    %12 = arith.addf %11, %10 : vector<1x64x128xf32>
    %c0_20 = arith.constant 0 : index
    %c0_21 = arith.constant 0 : index
    %c0_22 = arith.constant 0 : index
    %13 = vector.load %arg7[%c0_20, %c0_21, %c0_22] : memref<1x64x128xf32, #tpu.memory_space<vmem>>, vector<1x64x128xf32>
    tpu.vector_store %arg7[%c0_20, %c0_21, %c0_22], %12 {strides = array<i32>} : memref<1x64x128xf32, #tpu.memory_space<vmem>>, vector<1x64x128xf32>,
    %c0_23 = arith.constant 0 : index
    %c0_24 = arith.constant 0 : index
    %c0_25 = arith.constant 0 : index
    %14 = vector.load %arg8[%c0_23, %c0_24, %c0_25] : memref<1x64x128xf32, #tpu.memory_space<vmem>>, vector<1x64x128xf32>
    %15 = arith.maximumf %14, %10 : vector<1x64x128xf32>
    %c0_26 = arith.constant 0 : index
    %c0_27 = arith.constant 0 : index
    %c0_28 = arith.constant 0 : index
    %16 = vector.load %arg8[%c0_26, %c0_27, %c0_28] : memref<1x64x128xf32, #tpu.memory_space<vmem>>, vector<1x64x128xf32>
    tpu.vector_store %arg8[%c0_26, %c0_27, %c0_28], %15 {strides = array<i32>} : memref<1x64x128xf32, #tpu.memory_space<vmem>>, vector<1x64x128xf32>,
    %c0_i32_29 = arith.constant 0 : i32
    %17 = arith.cmpi eq, %arg1, %c0_i32_29 : i32
    %18 = arith.extui %17 : i1 to i32
    %c0_i32_30 = arith.constant 0 : i32
    %19 = arith.cmpi ne, %18, %c0_i32_30 : i32
    scf.if %19 {
      %c0_31 = arith.constant 0 : index
      %c0_32 = arith.constant 0 : index
      %c0_33 = arith.constant 0 : index
      %20 = vector.load %arg7[%c0_31, %c0_32, %c0_33] : memref<1x64x128xf32, #tpu.memory_space<vmem>>, vector<1x64x128xf32>
      %cst = arith.constant dense<0.000000e+00> : vector<1x64xf32>
      %21 = vector.multi_reduction <add>, %20, %cst [2] : vector<1x64x128xf32> to vector<1x64xf32>
      %cst_34 = arith.constant 3.906250e-03 : f32
      %22 = vector.broadcast %cst_34 : f32 to vector<1x64xf32>
      %23 = arith.mulf %21, %22 : vector<1x64xf32>
      %c0_35 = arith.constant 0 : index
      %c0_36 = arith.constant 0 : index
      %c0_37 = arith.constant 0 : index
      %24 = vector.load %arg8[%c0_35, %c0_36, %c0_37] : memref<1x64x128xf32, #tpu.memory_space<vmem>>, vector<1x64x128xf32>
      %cst_38 = arith.constant dense<0xFF800000> : vector<1x64xf32>
      %25 = vector.multi_reduction <maximumf>, %24, %cst_38 [2] : vector<1x64x128xf32> to vector<1x64xf32>
      %26 = tpu.concatenate %23, %25 in 0 : vector<1x64xf32>, vector<1x64xf32> -> vector<2x64xf32>
      %c0_39 = arith.constant 0 : index
      %c0_40 = arith.constant 0 : index
      %27 = vector.load %arg3[%c0_39, %c0_40] : memref<64x4xf32, #tpu.memory_space<vmem>>, vector<64x4xf32>
      %cst_41 = arith.constant dense<0.000000e+00> : vector<2x4xf32>
      %28 = tpu.matmul %26, %27, %cst_41 {dimension_numbers = #tpu.dot_dimension_numbers<[1], [0], [0], [1], [0, 0, 1, 1], [], []>} : vector<2x64xf32>, vector<64x4xf32>, vector<2x4xf32> -> vector<2x4xf32>
      %c0_42 = arith.constant 0 : index
      %c0_43 = arith.constant 0 : index
      %29 = vector.load %arg4[%c0_42, %c0_43] : memref<1x4xf32, #tpu.memory_space<vmem>>, vector<1x4xf32>
      %cst_44 = arith.constant 0.000000e+00 : f32
      %30 = vector.broadcast %cst_44 : f32 to vector<2x4xf32>
      %31 = arith.cmpf oge, %28, %30 : vector<2x4xf32>
      %32 = vector.broadcast %29 : vector<1x4xf32> to vector<2x4xf32>
      %33 = arith.mulf %32, %28 : vector<2x4xf32>
      %34 = arith.select %31, %28, %33 : vector<2x4xi1>, vector<2x4xf32>
      %c0_45 = arith.constant 0 : index
      %c0_46 = arith.constant 0 : index
      %35 = vector.load %arg5[%c0_45, %c0_46] : memref<4x64xf32, #tpu.memory_space<vmem>>, vector<4x64xf32>
      %cst_47 = arith.constant dense<0.000000e+00> : vector<2x64xf32>
      %36 = tpu.matmul %34, %35, %cst_47 {dimension_numbers = #tpu.dot_dimension_numbers<[1], [0], [0], [1], [0, 0, 1, 1], [], []>} : vector<2x4xf32>, vector<4x64xf32>, vector<2x64xf32> -> vector<2x64xf32>
      %37 = vector.extract_strided_slice %36 {offsets = [0, 0], sizes = [1, 64], strides = [1, 1]} : vector<2x64xf32> to vector<1x64xf32>
      %38 = vector.extract_strided_slice %36 {offsets = [1, 0], sizes = [1, 64], strides = [1, 1]} : vector<2x64xf32> to vector<1x64xf32>
      %39 = arith.addf %37, %38 : vector<1x64xf32>
      %40 = arith.negf %39 : vector<1x64xf32>
      %41 = math.exp %40 : vector<1x64xf32>
      %cst_48 = arith.constant 1.000000e+00 : f32
      %42 = vector.broadcast %cst_48 : f32 to vector<1x64xf32>
      %43 = arith.addf %42, %41 : vector<1x64xf32>
      %44 = arith.divf %42, %43 : vector<1x64xf32>
      %c0_49 = arith.constant 0 : index
      %c0_50 = arith.constant 0 : index
      %c0_51 = arith.constant 0 : index
      %45 = vector.load %arg6[%c0_49, %c0_50, %c0_51] : memref<1x1x64xf32, #tpu.memory_space<vmem>>, vector<1x1x64xf32>
      %46 = vector.shape_cast %45 : vector<1x1x64xf32> to vector<1x64xf32>
      %47 = vector.shape_cast %44 : vector<1x64xf32> to vector<1x1x64xf32>
      tpu.vector_store %arg6[%c0_49, %c0_50, %c0_51], %47 {strides = array<i32>} : memref<1x1x64xf32, #tpu.memory_space<vmem>>, vector<1x1x64xf32>,
    } else {
    }
    return
  }
  func.func @transform_0(%arg0: i32, %arg1: i32) -> (i32, i32, i32) {
    %c0_i32 = arith.constant 0 : i32
    %c0_i32_0 = arith.constant 0 : i32
    return %arg0, %c0_i32, %arg1 : i32, i32, i32
  }
  func.func @transform_1(%arg0: i32, %arg1: i32) -> (i32, i32) {
    %c0_i32 = arith.constant 0 : i32
    %c0_i32_0 = arith.constant 0 : i32
    %c0_i32_1 = arith.constant 0 : i32
    return %c0_i32, %c0_i32_0 : i32, i32
  }
  func.func @transform_2(%arg0: i32, %arg1: i32) -> (i32, i32) {
    %c0_i32 = arith.constant 0 : i32
    %c0_i32_0 = arith.constant 0 : i32
    %c0_i32_1 = arith.constant 0 : i32
    return %c0_i32, %c0_i32_0 : i32, i32
  }
  func.func @transform_3(%arg0: i32, %arg1: i32) -> (i32, i32) {
    %c0_i32 = arith.constant 0 : i32
    %c0_i32_0 = arith.constant 0 : i32
    %c0_i32_1 = arith.constant 0 : i32
    return %c0_i32, %c0_i32_0 : i32, i32
  }
  func.func @transform_4(%arg0: i32, %arg1: i32) -> (i32, i32, i32) {
    %c0_i32 = arith.constant 0 : i32
    %c0_i32_0 = arith.constant 0 : i32
    %c0_i32_1 = arith.constant 0 : i32
    return %arg0, %c0_i32, %c0_i32_0 : i32, i32, i32
  }
}

</mosaic_0001>

<llo_original>
// kernel: tpu_custom_call.1
$region0: #{tpu_custom_call.1}
  #allocation0 [shape = 'u32[]', space=smem, size = 0x4, offset = 0x4, fixed_abs, tag = 'smem constant byte address 0x4 - core index']
  #allocation1 [shape = 'u32[144,128]{1,0:T(1,128)}', space=vmem, size = 0x12000, scoped, tag = 'internal scratch']
  #allocation2 [shape = 'f32[1,64,128]{2,1,0:T(8,128)}', space=vmem, size = 0x8000, scoped, tag = 'scratch operand']
  #allocation3 [shape = 'f32[1,64,128]{2,1,0:T(8,128)}', space=vmem, size = 0x8000, scoped, tag = 'scratch operand']
  %s0 = inlined_call_operand.hbm [shape: f32[2,64,256], index: 0, kind: input, shape index: {}]
  %s1 = inlined_call_operand.vmem [shape: f32[64,4], index: 1, kind: input, shape index: {}]
  %s2 = inlined_call_operand.vmem [shape: f32[1,4], index: 2, kind: input, shape index: {}]
  %s3 = inlined_call_operand.vmem [shape: f32[4,64], index: 3, kind: input, shape index: {}]
  %s4 = inlined_call_operand.hbm [shape: f32[2,1,64], index: 4, kind: output, shape index: {}]
  %s5 = sld [smem:[#allocation0]]
  $region61: #{tpu_custom_call.1} parent=0
    _
  %s7 = ssub.s32 1, %s5
  %s8 = scalar_select 0, %s7, %s5
  $region1: #{tpu_custom_call.1} parent=0
    #allocation4 [shape = 'u8[131072]{0}', space=vmem, size = 0x20000, scoped, tag = 'input window, operand 0']
    #allocation5 [shape = 's32[2]{0}', space=sflag, size = 0x8, scoped, tag = 'scoped memory for tpu_custom_call.1']
    #allocation6 [shape = 's32[2]{0}', space=sflag, size = 0x8, scoped, tag = 'scoped memory for tpu_custom_call.1']
    #allocation7 [shape = 'u8[1024]{0}', space=vmem, size = 0x400, scoped, tag = 'output window, operand 0']
    %9 = vsyncpa [#allocation5], 0
    %s10 = scalar_lea.sflag [#allocation5], 1
    %11 = vsyncpa %s10, 0
    %12 = vsyncpa [#allocation6], 0
    %s13 = scalar_lea.sflag [#allocation6], 1
    %14 = vsyncpa %s13, 0
    loop: start=0, step=1, limit=4
    $region2: #{tpu_custom_call.1} parent=1 // loop_pre_header
      _
    $region3: #{tpu_custom_call.1} parent=1 // loop_header
      %s16 = sphi 0, %s20
      %p17 = scmp.ge.s32.totalorder %s16, 4
      %s23 = sphi 0, %s35
      %s24 = sphi 0, %s31
      %s25 = sphi 0, %s23
      %s26 = sphi 0, %s24
      %s27 = sphi 0, %s25
      %s28 = sphi 0, %s26
      %s40 = sphi 0, %s42
      %s43 = sphi 0, %s40
      %s44 = sphi 0, %s43
      %s60 = sphi 0, %s44
      %s64 = sphi 0, %s64
      %s66 = sphi 0, %s64
      %s67 = sphi 0, %s66
      %s81 = sphi 0, %s67
      %s85 = sphi 0, %s85
      %s87 = sphi 0, %s85
      %s88 = sphi 0, %s87
      %s102 = sphi 0, %s88
      %s106 = sphi 0, %s106
      %s108 = sphi 0, %s106
      %s109 = sphi 0, %s108
      %s123 = sphi 0, %s109
      %s129 = sphi 0, %s131
      %s132 = sphi 0, %s129
      %s133 = sphi 0, %s132
      %s149 = sphi 0, %s133
    $region4: #{tpu_custom_call.1} parent=1 // loop_header_branch
      %19 = sbr.rel (%p17) target = $region8
    $region5: #{tpu_custom_call.1} parent=1 // loop_body
      %s21 = ssub.s32 %s16, 1
      %s22 = ssub.s32 %s16, 2
      %s29 = sadd.s32 1, %s24
      %p30 = scmp.ge.s32.totalorder %s29, 1
      %s31 = scalar_select %p30, 0, %s29
      %s32 = sadd.s32 1, %s23
      %s33 = scalar_select %p30, %s32, %s23
      %p34 = scmp.ge.s32.totalorder %s33, 2
      %s35 = scalar_select %p34, 0, %s33
      %s36 = ssub.s32 %s23, %s35
      %s37 = ssub.s32 %s24, %s31
      %s38 = sor.u32 %s36, %s37
      %p39 = scmp.eq.s32.totalorder %s38, 0
      %s41 = sadd.s32 %s40, 1
      %s42 = scalar_select %p39, %s40, %s41
      %p45 = pneg %p39
      %p46 = scmp.eq.s32.totalorder %s16, 1
      %p47 = por %p45, %p46
      %p48 = scmp.ne.s32.totalorder %s40, %s43
      %p49 = scmp.eq.s32.totalorder %s16, 0
      %p50 = por %p48, %p49
      %p51 = scmp.ne.s32.totalorder %s40, %s43
      %p52 = scmp.eq.s32.totalorder %s21, 1
      %p53 = por %p51, %p52
      %p54 = scmp.ne.s32.totalorder %s43, %s44
      %p55 = scmp.eq.s32.totalorder %s21, 0
      %p56 = por %p54, %p55
      %p57 = scmp.ne.s32.totalorder %s43, %s44
      %p58 = scmp.eq.s32.totalorder %s22, 1
      %p59 = por %p57, %p58
      %p61 = scmp.ne.s32.totalorder %s44, %s60
      %p62 = scmp.eq.s32.totalorder %s22, 0
      %p63 = por %p61, %p62
      %s65 = sadd.s32 %s64, 1
      %p68 = scmp.eq.s32.totalorder %s16, 1
      %p69 = scmp.ne.s32.totalorder %s64, %s66
      %p70 = scmp.eq.s32.totalorder %s16, 0
      %p71 = por %p69, %p70
      %p72 = scmp.ne.s32.totalorder %s64, %s66
      %p73 = scmp.eq.s32.totalorder %s21, 1
      %p74 = por %p72, %p73
      %p75 = scmp.ne.s32.totalorder %s66, %s67
      %p76 = scmp.eq.s32.totalorder %s21, 0
      %p77 = por %p75, %p76
      %p78 = scmp.ne.s32.totalorder %s66, %s67
      %p79 = scmp.eq.s32.totalorder %s22, 1
      %p80 = por %p78, %p79
      %p82 = scmp.ne.s32.totalorder %s67, %s81
      %p83 = scmp.eq.s32.totalorder %s22, 0
      %p84 = por %p82, %p83
      %s86 = sadd.s32 %s85, 1
      %p89 = scmp.eq.s32.totalorder %s16, 1
      %p90 = scmp.ne.s32.totalorder %s85, %s87
      %p91 = scmp.eq.s32.totalorder %s16, 0
      %p92 = por %p90, %p91
      %p93 = scmp.ne.s32.totalorder %s85, %s87
      %p94 = scmp.eq.s32.totalorder %s21, 1
      %p95 = por %p93, %p94
      %p96 = scmp.ne.s32.totalorder %s87, %s88
      %p97 = scmp.eq.s32.totalorder %s21, 0
      %p98 = por %p96, %p97
      %p99 = scmp.ne.s32.totalorder %s87, %s88
      %p100 = scmp.eq.s32.totalorder %s22, 1
      %p101 = por %p99, %p100
      %p103 = scmp.ne.s32.totalorder %s88, %s102
      %p104 = scmp.eq.s32.totalorder %s22, 0
      %p105 = por %p103, %p104
      %s107 = sadd.s32 %s106, 1
      %p110 = scmp.eq.s32.totalorder %s16, 1
      %p111 = scmp.ne.s32.totalorder %s106, %s108
      %p112 = scmp.eq.s32.totalorder %s16, 0
      %p113 = por %p111, %p112
      %p114 = scmp.ne.s32.totalorder %s106, %s108
      %p115 = scmp.eq.s32.totalorder %s21, 1
      %p116 = por %p114, %p115
      %p117 = scmp.ne.s32.totalorder %s108, %s109
      %p118 = scmp.eq.s32.totalorder %s21, 0
      %p119 = por %p117, %p118
      %p120 = scmp.ne.s32.totalorder %s108, %s109
      %p121 = scmp.eq.s32.totalorder %s22, 1
      %p122 = por %p120, %p121
      %p124 = scmp.ne.s32.totalorder %s109, %s123
      %p125 = scmp.eq.s32.totalorder %s22, 0
      %p126 = por %p124, %p125
      %s127 = ssub.s32 %s23, %s35
      %p128 = scmp.eq.s32.totalorder %s127, 0
      %s130 = sadd.s32 %s129, 1
      %s131 = scalar_select %p128, %s129, %s130
      %p134 = pneg %p128
      %p135 = scmp.eq.s32.totalorder %s16, 1
      %p136 = por %p134, %p135
      %p137 = scmp.ne.s32.totalorder %s129, %s132
      %p138 = scmp.eq.s32.totalorder %s16, 0
      %p139 = por %p137, %p138
      %p140 = scmp.ne.s32.totalorder %s129, %s132
      %p141 = scmp.eq.s32.totalorder %s21, 1
      %p142 = por %p140, %p141
      %p143 = scmp.ne.s32.totalorder %s132, %s133
      %p144 = scmp.eq.s32.totalorder %s21, 0
      %p145 = por %p143, %p144
      %p146 = scmp.ne.s32.totalorder %s132, %s133
      %p147 = scmp.eq.s32.totalorder %s22, 1
      %p148 = por %p146, %p147
      %p150 = scmp.ne.s32.totalorder %s133, %s149
      %p151 = scmp.eq.s32.totalorder %s22, 0
      %p152 = por %p150, %p151
      %p153 = scmp.le.s32.totalorder 1, %s16
      %p154 = scmp.lt.s32.totalorder %s16, 3
      %p155 = pnand %p153, %p154
      %p156 = pneg %p155
      // Predicated region
      $region9: #{tpu_custom_call.1} parent=5 // pred_check
        _
      $region10: #{tpu_custom_call.1} parent=5 // pred_check_branch
        %158 = sbr.rel (%p155) target = $region12
      $region11: #{tpu_custom_call.1} parent=5 // pred_region
        %s159 = ssub.s32 %s16, 1
        // Predicated region
        $region13: #{tpu_custom_call.1} parent=11 // pred_check
          %p160 = pneg %p77
        $region14: #{tpu_custom_call.1} parent=11 // pred_check_branch
          %162 = sbr.rel (%p160) target = $region16
        $region15: #{tpu_custom_call.1} parent=11 // pred_region
          _
        $region16: #{tpu_custom_call.1} parent=11 // pred_fallthru
          _
        // Predicated region
        $region17: #{tpu_custom_call.1} parent=11 // pred_check
          %p163 = pneg %p98
        $region18: #{tpu_custom_call.1} parent=11 // pred_check_branch
          %165 = sbr.rel (%p163) target = $region20
        $region19: #{tpu_custom_call.1} parent=11 // pred_region
          _
        $region20: #{tpu_custom_call.1} parent=11 // pred_fallthru
          _
        // Predicated region
        $region21: #{tpu_custom_call.1} parent=11 // pred_check
          %p166 = pneg %p119
        $region22: #{tpu_custom_call.1} parent=11 // pred_check_branch
          %168 = sbr.rel (%p166) target = $region24
        $region23: #{tpu_custom_call.1} parent=11 // pred_region
          _
        $region24: #{tpu_custom_call.1} parent=11 // pred_fallthru
          _
      $region12: #{tpu_custom_call.1} parent=5 // pred_fallthru
        _
      %p169 = scmp.lt.s32.totalorder %s16, 2
      // Predicated region
      $region25: #{tpu_custom_call.1} parent=5 // pred_check
        %p170 = pneg %p169
      $region26: #{tpu_custom_call.1} parent=5 // pred_check_branch
        %172 = sbr.rel (%p170) target = $region28
      $region27: #{tpu_custom_call.1} parent=5 // pred_region
        // Predicated region
        $region29: #{tpu_custom_call.1} parent=27 // pred_check
          %p173 = pneg %p50
        $region30: #{tpu_custom_call.1} parent=27 // pred_check_branch
          %175 = sbr.rel (%p173) target = $region32
        $region31: #{tpu_custom_call.1} parent=27 // pred_region
          %s176 = sand.u32 %s40, 1
          %s177 = scalar_lea.sflag [#allocation5], %s176
          %s178 = sand.u32 %s40, 1
          %s179 = smul.addr %s178, 128
          %s180 = scalar_lea.vmem [#allocation4], %s179
          %s181 = smul.u32 2, %s24
          %s183 = ssub.s32 2048, 2048
          %184 = vsyncadd %s177, %s183
          %s185 = smul.addr %s23, 16
          %s186 = sadd.s32 %s181, %s185
          %s187 = smul.addr %s186, 128
          %s188 = scalar_lea.hbm %s0, %s187
          %s189 = sshll.u32 %s180, 4
          %s190 = int_to_ptr.vmem [resolvable:$true] %s189
          %195 = dma.hbm_to_vmem [thread:$0]  %s188, 2048, %s190, %s177, 256, 256, 16
        $region32: #{tpu_custom_call.1} parent=27 // pred_fallthru
          _
      $region28: #{tpu_custom_call.1} parent=5 // pred_fallthru
        _
      %p196 = scmp.le.s32.totalorder 1, %s16
      %p197 = scmp.lt.s32.totalorder %s16, 3
      %p198 = pnand %p196, %p197
      %p199 = pneg %p198
      // Predicated region
      $region33: #{tpu_custom_call.1} parent=5 // pred_check
        _
      $region34: #{tpu_custom_call.1} parent=5 // pred_check_branch
        %201 = sbr.rel (%p198) target = $region36
      $region35: #{tpu_custom_call.1} parent=5 // pred_region
        %s202 = ssub.s32 %s16, 1
        %s203 = sand.u32 %s43, 1
        %s204 = scalar_lea.sflag [#allocation5], %s203
        %s205 = sand.u32 %s43, 1
        %s206 = smul.addr %s205, 128
        %s207 = scalar_lea.vmem [#allocation4], %s206
        // Predicated region
        $region37: #{tpu_custom_call.1} parent=35 // pred_check
          %p208 = pneg %p56
        $region38: #{tpu_custom_call.1} parent=35 // pred_check_branch
          %210 = sbr.rel (%p208) target = $region40
        $region39: #{tpu_custom_call.1} parent=35 // pred_region
          %211 = dma.done %s204, 2048
        $region40: #{tpu_custom_call.1} parent=35 // pred_fallthru
          _
        %s212 = sand.u32 %s43, 1
        %s213 = scalar_lea.sflag [#allocation5], %s212
        %s214 = sand.u32 %s43, 1
        %s215 = smul.addr %s214, 128
        %s216 = scalar_lea.vmem [#allocation4], %s215
        %p217 = pneg %p56
        %p218 = pneg %p53
        %p219 = pneg %p77
        %p220 = pneg %p74
        %p221 = pneg %p98
        %p222 = pneg %p95
        %p223 = pneg %p119
        %p224 = pneg %p116
        %p225 = pneg %p145
        %p226 = pneg %p142
        %s227 = sand.u32 %s132, 1
        %s228 = scalar_lea.sflag [#allocation6], %s227
        %s229 = sand.u32 %s132, 1
        %s230 = scalar_lea.vmem [#allocation7], %s229
        %s231 = smul.u32 2, %s26
        %p232 = scmp.eq.s32.totalorder %s26, 0
        // Predicated region
        $region41: #{tpu_custom_call.1} parent=35 // pred_check
          %p233 = pneg %p232
        $region42: #{tpu_custom_call.1} parent=35 // pred_check_branch
          %235 = sbr.rel (%p233) target = $region44
        $region43: #{tpu_custom_call.1} parent=35 // pred_region
          %236 = vst [vmem:[#allocation2] sm:$0xff] 0.0
          %237 = vst [vmem:[#allocation2 + $0x8] sm:$0xff] 0.0
          %238 = vst [vmem:[#allocation2 + $0x10] sm:$0xff] 0.0
          %239 = vst [vmem:[#allocation2 + $0x18] sm:$0xff] 0.0
          %240 = vst [vmem:[#allocation2 + $0x20] sm:$0xff] 0.0
          %241 = vst [vmem:[#allocation2 + $0x28] sm:$0xff] 0.0
          %242 = vst [vmem:[#allocation2 + $0x30] sm:$0xff] 0.0
          %243 = vst [vmem:[#allocation2 + $0x38] sm:$0xff] 0.0
          %244 = vst [vmem:[#allocation3] sm:$0xff] -inf
          %245 = vst [vmem:[#allocation3 + $0x8] sm:$0xff] -inf
          %246 = vst [vmem:[#allocation3 + $0x10] sm:$0xff] -inf
          %247 = vst [vmem:[#allocation3 + $0x18] sm:$0xff] -inf
          %248 = vst [vmem:[#allocation3 + $0x20] sm:$0xff] -inf
          %249 = vst [vmem:[#allocation3 + $0x28] sm:$0xff] -inf
          %250 = vst [vmem:[#allocation3 + $0x30] sm:$0xff] -inf
          %251 = vst [vmem:[#allocation3 + $0x38] sm:$0xff] -inf
        $region44: #{tpu_custom_call.1} parent=35 // pred_fallthru
          _
        %v252 = vld [vmem:[%s207] sm:$0xff]
        %v253 = vld [vmem:[%s207 + $0x10] sm:$0xff]
        %v254 = vld [vmem:[%s207 + $0x20] sm:$0xff]
        %v255 = vld [vmem:[%s207 + $0x30] sm:$0xff]
        %v256 = vld [vmem:[%s207 + $0x40] sm:$0xff]
        %v257 = vld [vmem:[%s207 + $0x50] sm:$0xff]
        %v258 = vld [vmem:[%s207 + $0x60] sm:$0xff]
        %v259 = vld [vmem:[%s207 + $0x70] sm:$0xff]
        %v260 = vld [vmem:[#allocation2] sm:$0xff]
        %v261 = vld [vmem:[#allocation2 + $0x8] sm:$0xff]
        %v262 = vld [vmem:[#allocation2 + $0x10] sm:$0xff]
        %v263 = vld [vmem:[#allocation2 + $0x18] sm:$0xff]
        %v264 = vld [vmem:[#allocation2 + $0x20] sm:$0xff]
        %v265 = vld [vmem:[#allocation2 + $0x28] sm:$0xff]
        %v266 = vld [vmem:[#allocation2 + $0x30] sm:$0xff]
        %v267 = vld [vmem:[#allocation2 + $0x38] sm:$0xff]
        %v268 = vadd.f32 %v260, %v252
        %v269 = vadd.f32 %v261, %v253
        %v270 = vadd.f32 %v262, %v254
        %v271 = vadd.f32 %v263, %v255
        %v272 = vadd.f32 %v264, %v256
        %v273 = vadd.f32 %v265, %v257
        %v274 = vadd.f32 %v266, %v258
        %v275 = vadd.f32 %v267, %v259
        %276 = vst [vmem:[#allocation2] sm:$0xff] %v268
        %277 = vst [vmem:[#allocation2 + $0x8] sm:$0xff] %v269
        %278 = vst [vmem:[#allocation2 + $0x10] sm:$0xff] %v270
        %279 = vst [vmem:[#allocation2 + $0x18] sm:$0xff] %v271
        %280 = vst [vmem:[#allocation2 + $0x20] sm:$0xff] %v272
        %281 = vst [vmem:[#allocation2 + $0x28] sm:$0xff] %v273
        %282 = vst [vmem:[#allocation2 + $0x30] sm:$0xff] %v274
        %283 = vst [vmem:[#allocation2 + $0x38] sm:$0xff] %v275
        %v284 = vld [vmem:[#allocation3] sm:$0xff]
        %v285 = vld [vmem:[#allocation3 + $0x8] sm:$0xff]
        %v286 = vld [vmem:[#allocation3 + $0x10] sm:$0xff]
        %v287 = vld [vmem:[#allocation3 + $0x18] sm:$0xff]
        %v288 = vld [vmem:[#allocation3 + $0x20] sm:$0xff]
        %v289 = vld [vmem:[#allocation3 + $0x28] sm:$0xff]
        %v290 = vld [vmem:[#allocation3 + $0x30] sm:$0xff]
        %v291 = vld [vmem:[#allocation3 + $0x38] sm:$0xff]
        %v292 = vmax.f32 %v284, %v252
        %v293 = vmax.f32 %v285, %v253
        %v294 = vmax.f32 %v286, %v254
        %v295 = vmax.f32 %v287, %v255
        %v296 = vmax.f32 %v288, %v256
        %v297 = vmax.f32 %v289, %v257
        %v298 = vmax.f32 %v290, %v258
        %v299 = vmax.f32 %v291, %v259
        %300 = vst [vmem:[#allocation3] sm:$0xff] %v292
        %301 = vst [vmem:[#allocation3 + $0x8] sm:$0xff] %v293
        %302 = vst [vmem:[#allocation3 + $0x10] sm:$0xff] %v294
        %303 = vst [vmem:[#allocation3 + $0x18] sm:$0xff] %v295
        %304 = vst [vmem:[#allocation3 + $0x20] sm:$0xff] %v296
        %305 = vst [vmem:[#allocation3 + $0x28] sm:$0xff] %v297
        %306 = vst [vmem:[#allocation3 + $0x30] sm:$0xff] %v298
        %307 = vst [vmem:[#allocation3 + $0x38] sm:$0xff] %v299
        %v308 = vld [vmem:[%s207 + $0x8] sm:$0xff]
        %v309 = vld [vmem:[%s207 + $0x18] sm:$0xff]
        %v310 = vld [vmem:[%s207 + $0x28] sm:$0xff]
        %v311 = vld [vmem:[%s207 + $0x38] sm:$0xff]
        %v312 = vld [vmem:[%s207 + $0x48] sm:$0xff]
        %v313 = vld [vmem:[%s207 + $0x58] sm:$0xff]
        %v314 = vld [vmem:[%s207 + $0x68] sm:$0xff]
        %v315 = vld [vmem:[%s207 + $0x78] sm:$0xff]
        %v316 = vld [vmem:[#allocation2] sm:$0xff]
        %v317 = vld [vmem:[#allocation2 + $0x8] sm:$0xff]
        %v318 = vld [vmem:[#allocation2 + $0x10] sm:$0xff]
        %v319 = vld [vmem:[#allocation2 + $0x18] sm:$0xff]
        %v320 = vld [vmem:[#allocation2 + $0x20] sm:$0xff]
        %v321 = vld [vmem:[#allocation2 + $0x28] sm:$0xff]
        %v322 = vld [vmem:[#allocation2 + $0x30] sm:$0xff]
        %v323 = vld [vmem:[#allocation2 + $0x38] sm:$0xff]
        %v324 = vadd.f32 %v316, %v308
        %v325 = vadd.f32 %v317, %v309
        %v326 = vadd.f32 %v318, %v310
        %v327 = vadd.f32 %v319, %v311
        %v328 = vadd.f32 %v320, %v312
        %v329 = vadd.f32 %v321, %v313
        %v330 = vadd.f32 %v322, %v314
        %v331 = vadd.f32 %v323, %v315
        %332 = vst [vmem:[#allocation2] sm:$0xff] %v324
        %333 = vst [vmem:[#allocation2 + $0x8] sm:$0xff] %v325
        %334 = vst [vmem:[#allocation2 + $0x10] sm:$0xff] %v326
        %335 = vst [vmem:[#allocation2 + $0x18] sm:$0xff] %v327
        %336 = vst [vmem:[#allocation2 + $0x20] sm:$0xff] %v328
        %337 = vst [vmem:[#allocation2 + $0x28] sm:$0xff] %v329
        %338 = vst [vmem:[#allocation2 + $0x30] sm:$0xff] %v330
        %339 = vst [vmem:[#allocation2 + $0x38] sm:$0xff] %v331
        %v340 = vld [vmem:[#allocation3] sm:$0xff]
        %v341 = vld [vmem:[#allocation3 + $0x8] sm:$0xff]
        %v342 = vld [vmem:[#allocation3 + $0x10] sm:$0xff]
        %v343 = vld [vmem:[#allocation3 + $0x18] sm:$0xff]
        %v344 = vld [vmem:[#allocation3 + $0x20] sm:$0xff]
        %v345 = vld [vmem:[#allocation3 + $0x28] sm:$0xff]
        %v346 = vld [vmem:[#allocation3 + $0x30] sm:$0xff]
        %v347 = vld [vmem:[#allocation3 + $0x38] sm:$0xff]
        %v348 = vmax.f32 %v340, %v308
        %v349 = vmax.f32 %v341, %v309
        %v350 = vmax.f32 %v342, %v310
        %v351 = vmax.f32 %v343, %v311
        %v352 = vmax.f32 %v344, %v312
        %v353 = vmax.f32 %v345, %v313
        %v354 = vmax.f32 %v346, %v314
        %v355 = vmax.f32 %v347, %v315
        %356 = vst [vmem:[#allocation3] sm:$0xff] %v348
        %357 = vst [vmem:[#allocation3 + $0x8] sm:$0xff] %v349
        %358 = vst [vmem:[#allocation3 + $0x10] sm:$0xff] %v350
        %359 = vst [vmem:[#allocation3 + $0x18] sm:$0xff] %v351
        %360 = vst [vmem:[#allocation3 + $0x20] sm:$0xff] %v352
        %361 = vst [vmem:[#allocation3 + $0x28] sm:$0xff] %v353
        %362 = vst [vmem:[#allocation3 + $0x30] sm:$0xff] %v354
        %363 = vst [vmem:[#allocation3 + $0x38] sm:$0xff] %v355
        // Predicated region
        $region45: #{tpu_custom_call.1} parent=35 // pred_check
          %p364 = pneg %p232
        $region46: #{tpu_custom_call.1} parent=35 // pred_check_branch
          %366 = sbr.rel (%p364) target = $region48
        $region47: #{tpu_custom_call.1} parent=35 // pred_region
          %v367 = vld [vmem:[#allocation2] sm:$0xff]
          %v368 = vld [vmem:[#allocation2 + $0x8] sm:$0xff]
          %v369 = vld [vmem:[#allocation2 + $0x10] sm:$0xff]
          %v370 = vld [vmem:[#allocation2 + $0x18] sm:$0xff]
          %v371 = vld [vmem:[#allocation2 + $0x20] sm:$0xff]
          %v372 = vld [vmem:[#allocation2 + $0x28] sm:$0xff]
          %v373 = vld [vmem:[#allocation2 + $0x30] sm:$0xff]
          %v374 = vld [vmem:[#allocation2 + $0x38] sm:$0xff]
          %375 = vadd.xlane.f32.xlu0 %v367
          %v376 = vpop.xlane.xlu0 %375
          %377 = vadd.xlane.f32.xlu0 %v368
          %v378 = vpop.xlane.xlu0 %377
          %379 = vadd.xlane.f32.xlu0 %v369
          %v380 = vpop.xlane.xlu0 %379
          %381 = vadd.xlane.f32.xlu0 %v370
          %v382 = vpop.xlane.xlu0 %381
          %383 = vadd.xlane.f32.xlu0 %v371
          %v384 = vpop.xlane.xlu0 %383
          %385 = vadd.xlane.f32.xlu0 %v372
          %v386 = vpop.xlane.xlu0 %385
          %387 = vadd.xlane.f32.xlu0 %v373
          %v388 = vpop.xlane.xlu0 %387
          %389 = vadd.xlane.f32.xlu0 %v374
          %v390 = vpop.xlane.xlu0 %389
          %v391 = vmul.f32 %v376, 0.00390625
          %v392 = vmul.f32 %v378, 0.00390625
          %v393 = vmul.f32 %v380, 0.00390625
          %v394 = vmul.f32 %v382, 0.00390625
          %v395 = vmul.f32 %v384, 0.00390625
          %v396 = vmul.f32 %v386, 0.00390625
          %v397 = vmul.f32 %v388, 0.00390625
          %v398 = vmul.f32 %v390, 0.00390625
          %v399 = vld [vmem:[#allocation3] sm:$0xff]
          %v400 = vld [vmem:[#allocation3 + $0x8] sm:$0xff]
          %v401 = vld [vmem:[#allocation3 + $0x10] sm:$0xff]
          %v402 = vld [vmem:[#allocation3 + $0x18] sm:$0xff]
          %v403 = vld [vmem:[#allocation3 + $0x20] sm:$0xff]
          %v404 = vld [vmem:[#allocation3 + $0x28] sm:$0xff]
          %v405 = vld [vmem:[#allocation3 + $0x30] sm:$0xff]
          %v406 = vld [vmem:[#allocation3 + $0x38] sm:$0xff]
          %407 = vmax.xlane.f32.xlu0 %v399
          %v408 = vpop.xlane.xlu0 %407
          %409 = vmax.xlane.f32.xlu0 %v400
          %v410 = vpop.xlane.xlu0 %409
          %411 = vmax.xlane.f32.xlu0 %v401
          %v412 = vpop.xlane.xlu0 %411
          %413 = vmax.xlane.f32.xlu0 %v402
          %v414 = vpop.xlane.xlu0 %413
          %415 = vmax.xlane.f32.xlu0 %v403
          %v416 = vpop.xlane.xlu0 %415
          %417 = vmax.xlane.f32.xlu0 %v404
          %v418 = vpop.xlane.xlu0 %417
          %419 = vmax.xlane.f32.xlu0 %v405
          %v420 = vpop.xlane.xlu0 %419
          %421 = vmax.xlane.f32.xlu0 %v406
          %v422 = vpop.xlane.xlu0 %421
          %v431 = vlaneseq
          %v432 = vand.u32 %v431, 127
          %v433 = vlaneseq
          %v434 = vshrl.u32 %v433, 7
          %v435 = vsub.s32 %v432, %v434
          %v436 = vrot.slane %v391, %v435
          %v437 = vadd.s32 %v432, 4294967288
          %v438 = vlaneseq
          %v439 = vshrl.u32 %v438, 7
          %v440 = vsub.s32 %v437, %v439
          %v441 = vrot.slane %v392, %v440
          %vm442 = vcmask 130112
          %v443 = vsel %vm442, %v441, %v436
          %v444 = vadd.s32 %v432, 4294967280
          %v445 = vlaneseq
          %v446 = vshrl.u32 %v445, 7
          %v447 = vsub.s32 %v444, %v446
          %v448 = vrot.slane %v393, %v447
          %vm449 = vcmask 195712
          %v450 = vsel %vm449, %v448, %v443
          %v451 = vadd.s32 %v432, 4294967272
          %v452 = vlaneseq
          %v453 = vshrl.u32 %v452, 7
          %v454 = vsub.s32 %v451, %v453
          %v455 = vrot.slane %v394, %v454
          %vm456 = vcmask 261312
          %v457 = vsel %vm456, %v455, %v450
          %v458 = vadd.s32 %v432, 4294967264
          %v459 = vlaneseq
          %v460 = vshrl.u32 %v459, 7
          %v461 = vsub.s32 %v458, %v460
          %v462 = vrot.slane %v395, %v461
          %vm463 = vcmask 326912
          %v464 = vsel %vm463, %v462, %v457
          %v465 = vadd.s32 %v432, 4294967256
          %v466 = vlaneseq
          %v467 = vshrl.u32 %v466, 7
          %v468 = vsub.s32 %v465, %v467
          %v469 = vrot.slane %v396, %v468
          %vm470 = vcmask 392512
          %v471 = vsel %vm470, %v469, %v464
          %v472 = vadd.s32 %v432, 4294967248
          %v473 = vlaneseq
          %v474 = vshrl.u32 %v473, 7
          %v475 = vsub.s32 %v472, %v474
          %v476 = vrot.slane %v397, %v475
          %vm477 = vcmask 458112
          %v478 = vsel %vm477, %v476, %v471
          %v479 = vadd.s32 %v432, 4294967240
          %v480 = vlaneseq
          %v481 = vshrl.u32 %v480, 7
          %v482 = vsub.s32 %v479, %v481
          %v483 = vrot.slane %v398, %v482
          %vm484 = vcmask 523712
          %v485 = vsel %vm484, %v483, %v478
          %v495 = vlaneseq
          %v496 = vshrl.u32 %v495, 7
          %v497 = vsub.s32 %v432, %v496
          %v498 = vrot.slane %v408, %v497
          %v499 = vlaneseq
          %v500 = vshrl.u32 %v499, 7
          %v501 = vsub.s32 %v437, %v500
          %v502 = vrot.slane %v410, %v501
          %v503 = vsel %vm442, %v502, %v498
          %v504 = vlaneseq
          %v505 = vshrl.u32 %v504, 7
          %v506 = vsub.s32 %v444, %v505
          %v507 = vrot.slane %v412, %v506
          %v508 = vsel %vm449, %v507, %v503
          %v509 = vlaneseq
          %v510 = vshrl.u32 %v509, 7
          %v511 = vsub.s32 %v451, %v510
          %v512 = vrot.slane %v414, %v511
          %v513 = vsel %vm456, %v512, %v508
          %v514 = vlaneseq
          %v515 = vshrl.u32 %v514, 7
          %v516 = vsub.s32 %v458, %v515
          %v517 = vrot.slane %v416, %v516
          %v518 = vsel %vm463, %v517, %v513
          %v519 = vlaneseq
          %v520 = vshrl.u32 %v519, 7
          %v521 = vsub.s32 %v465, %v520
          %v522 = vrot.slane %v418, %v521
          %v523 = vsel %vm470, %v522, %v518
          %v524 = vlaneseq
          %v525 = vshrl.u32 %v524, 7
          %v526 = vsub.s32 %v472, %v525
          %v527 = vrot.slane %v420, %v526
          %v528 = vsel %vm477, %v527, %v523
          %v529 = vlaneseq
          %v530 = vshrl.u32 %v529, 7
          %v531 = vsub.s32 %v479, %v530
          %v532 = vrot.slane %v422, %v531
          %v533 = vsel %vm484, %v532, %v528
          %vm535 = vcmask 1040384
          %v536 = vsel %vm535, %v485, %v533
          %v537 = vld [vmem:[%s1] sm:$0xff]
          %v538 = vld [vmem:[%s1 + $0x8] sm:$0xff]
          %v539 = vld [vmem:[%s1 + $0x10] sm:$0xff]
          %v540 = vld [vmem:[%s1 + $0x18] sm:$0xff]
          %v541 = vld [vmem:[%s1 + $0x20] sm:$0xff]
          %v542 = vld [vmem:[%s1 + $0x28] sm:$0xff]
          %v543 = vld [vmem:[%s1 + $0x30] sm:$0xff]
          %v544 = vld [vmem:[%s1 + $0x38] sm:$0xff]
          %vm545 = vcmask 523264
          %v547 = vsel %vm545, %v536, 0
          %549 = vmatprep.subr.mxu0 0.0
          %550 = vmatpush1.msra.mxu0 %v537
          %551 = vmatprep.subr.mxu0 0.0
          %552 = vmatpush1.msra.mxu0 %v538
          %553 = vmatprep.subr.mxu0 0.0
          %554 = vmatpush1.msra.mxu0 %v539
          %555 = vmatprep.subr.mxu0 0.0
          %556 = vmatpush1.msra.mxu0 %v540
          %557 = vmatprep.subr.mxu0 0.0
          %558 = vmatpush1.msra.mxu0 %v541
          %559 = vmatprep.subr.mxu0 0.0
          %560 = vmatpush1.msra.mxu0 %v542
          %561 = vmatprep.subr.mxu0 0.0
          %562 = vmatpush1.msra.mxu0 %v543
          %563 = vmatprep.subr.mxu0 0.0
          %564 = vmatpush1.msra.mxu0 %v544
          %565 = vmatprep.subr.mxu0 0.0
          %566 = vmatpush1.msra.mxu0 0.0
          %567 = vmatprep.subr.mxu0 0.0
          %568 = vmatpush1.msra.mxu0 0.0
          %569 = vmatprep.subr.mxu0 0.0
          %570 = vmatpush1.msra.mxu0 0.0
          %571 = vmatprep.subr.mxu0 0.0
          %572 = vmatpush1.msra.mxu0 0.0
          %573 = vmatprep.subr.mxu0 0.0
          %574 = vmatpush1.msra.mxu0 0.0
          %575 = vmatprep.subr.mxu0 0.0
          %576 = vmatpush1.msra.mxu0 0.0
          %577 = vmatprep.subr.mxu0 0.0
          %578 = vmatpush1.msra.mxu0 0.0
          %579 = vmatprep.subr.mxu0 0.0
          %580 = vmatpush1.msra.mxu0 0.0
          %581 = vmatprep.subr.mxu0 0.0
          %582 = vmatpush1.msra.mxu0 0.0
          %583 = vmatprep.subr.mxu0 0.0
          %584 = vmatpush1.msra.mxu0 0.0
          %585 = vmatprep.subr.mxu0 0.0
          %586 = vmatpush1.msra.mxu0 0.0
          %587 = vmatprep.subr.mxu0 0.0
          %588 = vmatpush1.msra.mxu0 0.0
          %589 = vmatprep.subr.mxu0 0.0
          %590 = vmatpush1.msra.mxu0 0.0
          %591 = vmatprep.subr.mxu0 0.0
          %592 = vmatpush1.msra.mxu0 0.0
          %593 = vmatprep.subr.mxu0 0.0
          %594 = vmatpush1.msra.mxu0 0.0
          %595 = vmatprep.subr.mxu0 0.0
          %596 = vmatpush1.msra.mxu0 0.0
          %597 = vmatprep.subr.mxu0 0.0
          %598 = vmatpush1.msra.mxu0 0.0
          %599 = vmatprep.subr.mxu0 0.0
          %600 = vmatpush1.msra.mxu0 0.0
          %601 = vmatprep.subr.mxu0 0.0
          %602 = vmatpush1.msra.mxu0 0.0
          %603 = vmatprep.subr.mxu0 0.0
          %604 = vmatpush1.msra.mxu0 0.0
          %605 = vmatprep.subr.mxu0 0.0
          %606 = vmatpush1.msra.mxu0 0.0
          %607 = vmatprep.subr.mxu0 0.0
          %608 = vmatpush1.msra.mxu0 0.0
          %609 = vmatprep.subr.mxu0 0.0
          %610 = vmatpush1.msra.mxu0 0.0
          %611 = vmatprep.subr.mxu0 0.0
          %612 = vmatpush1.msra.mxu0 0.0
          %613 = vmatprep.mubr.f32.mxu0 0.0
          %614 = vmatmul.mubr.f32.gmra.mrb[0].mxu0 %v547
          %v615 = vpop.f32.mrb[0].mxu0
          %v616 = vadd.f32 0.0, %v615
          %v617 = vpop.f32.mrb[0].mxu0
          %618 = vdwg.mxu0
          %v619 = vld [vmem:[%s2] sm:$0x1]
          %vm620 = vcmp.ge.f32.partialorder %v616, 0.0
          %v622 = vlaneseq
          %v623 = vshrl.u32 %v622, 7
          %v624 = vsub.s32 0, %v623
          %v625 = vrot.slane %v619, %v624
          %v627 = vmul.f32 %v625, %v616
          %v628 = vsel %vm620, %v616, %v627
          %v629 = vld [vmem:[%s3] sm:$0xf]
          %vm630 = vcmask 31744
          %v632 = vsel %vm630, %v628, 0
          %vm634 = vcmask 1043456
          %v636 = vsel %vm634, %v629, 0
          %638 = vmatprep.subr.mxu0 0.0
          %639 = vmatpush1.msra.mxu0 %v636
          %640 = vmatprep.subr.mxu0 0.0
          %641 = vmatpush1.msra.mxu0 0.0
          %642 = vmatprep.subr.mxu0 0.0
          %643 = vmatpush1.msra.mxu0 0.0
          %644 = vmatprep.subr.mxu0 0.0
          %645 = vmatpush1.msra.mxu0 0.0
          %646 = vmatprep.subr.mxu0 0.0
          %647 = vmatpush1.msra.mxu0 0.0
          %648 = vmatprep.subr.mxu0 0.0
          %649 = vmatpush1.msra.mxu0 0.0
          %650 = vmatprep.subr.mxu0 0.0
          %651 = vmatpush1.msra.mxu0 0.0
          %652 = vmatprep.subr.mxu0 0.0
          %653 = vmatpush1.msra.mxu0 0.0
          %654 = vmatprep.subr.mxu0 0.0
          %655 = vmatpush1.msra.mxu0 0.0
          %656 = vmatprep.subr.mxu0 0.0
          %657 = vmatpush1.msra.mxu0 0.0
          %658 = vmatprep.subr.mxu0 0.0
          %659 = vmatpush1.msra.mxu0 0.0
          %660 = vmatprep.subr.mxu0 0.0
          %661 = vmatpush1.msra.mxu0 0.0
          %662 = vmatprep.subr.mxu0 0.0
          %663 = vmatpush1.msra.mxu0 0.0
          %664 = vmatprep.subr.mxu0 0.0
          %665 = vmatpush1.msra.mxu0 0.0
          %666 = vmatprep.subr.mxu0 0.0
          %667 = vmatpush1.msra.mxu0 0.0
          %668 = vmatprep.subr.mxu0 0.0
          %669 = vmatpush1.msra.mxu0 0.0
          %670 = vmatprep.subr.mxu0 0.0
          %671 = vmatpush1.msra.mxu0 0.0
          %672 = vmatprep.subr.mxu0 0.0
          %673 = vmatpush1.msra.mxu0 0.0
          %674 = vmatprep.subr.mxu0 0.0
          %675 = vmatpush1.msra.mxu0 0.0
          %676 = vmatprep.subr.mxu0 0.0
          %677 = vmatpush1.msra.mxu0 0.0
          %678 = vmatprep.subr.mxu0 0.0
          %679 = vmatpush1.msra.mxu0 0.0
          %680 = vmatprep.subr.mxu0 0.0
          %681 = vmatpush1.msra.mxu0 0.0
          %682 = vmatprep.subr.mxu0 0.0
          %683 = vmatpush1.msra.mxu0 0.0
          %684 = vmatprep.subr.mxu0 0.0
          %685 = vmatpush1.msra.mxu0 0.0
          %686 = vmatprep.subr.mxu0 0.0
          %687 = vmatpush1.msra.mxu0 0.0
          %688 = vmatprep.subr.mxu0 0.0
          %689 = vmatpush1.msra.mxu0 0.0
          %690 = vmatprep.subr.mxu0 0.0
          %691 = vmatpush1.msra.mxu0 0.0
          %692 = vmatprep.subr.mxu0 0.0
          %693 = vmatpush1.msra.mxu0 0.0
          %694 = vmatprep.subr.mxu0 0.0
          %695 = vmatpush1.msra.mxu0 0.0
          %696 = vmatprep.subr.mxu0 0.0
          %697 = vmatpush1.msra.mxu0 0.0
          %698 = vmatprep.subr.mxu0 0.0
          %699 = vmatpush1.msra.mxu0 0.0
          %700 = vmatprep.subr.mxu0 0.0
          %701 = vmatpush1.msra.mxu0 0.0
          %702 = vmatprep.mubr.f32.mxu0 0.0
          %703 = vmatmul.mubr.f32.gmra.mrb[0].mxu0 %v632
          %v704 = vpop.f32.mrb[0].mxu0
          %v705 = vadd.f32 0.0, %v704
          %v706 = vpop.f32.mrb[0].mxu0
          %707 = vdwg.mxu0
          %v709 = vrot.slane %v705, 1
          %v711 = vadd.f32 %v705, %v709
          %v712 = vxor.u32 %v711, 2147483648
          %v713 = vmul.f32 %v712, 1.442695
          %v714 = vpow.pop %v713
          %v715 = vadd.f32 %v714, 1.0
          %v716 = vrcp.pop %v715
          %v717 = vmul.f32 1.0, %v716
          %vm718 = vcmask 516096
          %719 = vst.msk [vmem:[%s230] sm:$0x1] %vm718, %v717
        $region48: #{tpu_custom_call.1} parent=35 // pred_fallthru
          _
        %s720 = sand.u32 %s132, 1
        %s721 = scalar_lea.sflag [#allocation6], %s720
        %s722 = sand.u32 %s132, 1
        %s723 = scalar_lea.vmem [#allocation7], %s722
        // Predicated region
        $region49: #{tpu_custom_call.1} parent=35 // pred_check
          %p724 = pneg %p142
        $region50: #{tpu_custom_call.1} parent=35 // pred_check_branch
          %726 = sbr.rel (%p724) target = $region52
        $region51: #{tpu_custom_call.1} parent=35 // pred_region
          %s728 = ssub.s32 16, 16
          %729 = vsyncadd %s721, %s728
          %s730 = smul.addr %s25, 16
          %s731 = scalar_lea.hbm %s4, %s730
          %s733 = sshll.u32 %s723, 4
          %s734 = int_to_ptr.vmem [resolvable:$true] %s733
          %736 = dma.vmem_to_hbm [thread:$0]  %s734, 16, %s731, %s721
        $region52: #{tpu_custom_call.1} parent=35 // pred_fallthru
          _
      $region36: #{tpu_custom_call.1} parent=5 // pred_fallthru
        _
      %p737 = scmp.le.s32.totalorder 2, %s16
      // Predicated region
      $region53: #{tpu_custom_call.1} parent=5 // pred_check
        %p738 = pneg %p737
      $region54: #{tpu_custom_call.1} parent=5 // pred_check_branch
        %740 = sbr.rel (%p738) target = $region56
      $region55: #{tpu_custom_call.1} parent=5 // pred_region
        %s741 = ssub.s32 %s16, 2
        // Predicated region
        $region57: #{tpu_custom_call.1} parent=55 // pred_check
          %p742 = pneg %p148
        $region58: #{tpu_custom_call.1} parent=55 // pred_check_branch
          %744 = sbr.rel (%p742) target = $region60
        $region59: #{tpu_custom_call.1} parent=55 // pred_region
          %s745 = sand.u32 %s133, 1
          %s746 = scalar_lea.sflag [#allocation6], %s745
          %s747 = sand.u32 %s133, 1
          %s748 = scalar_lea.vmem [#allocation7], %s747
          %749 = dma.done %s746, 16
        $region60: #{tpu_custom_call.1} parent=55 // pred_fallthru
          _
      $region56: #{tpu_custom_call.1} parent=5 // pred_fallthru
        _
    $region6: #{tpu_custom_call.1} parent=1 // loop_footer
      %s20 = sadd.s32 1, %s16
    $region7: #{tpu_custom_call.1} parent=1 // loop_footer_branch
      %15 = sbr.rel target = $region3
    $region8: #{tpu_custom_call.1} parent=1 // loop_exit
      _
    %750 = vsyncpa [#allocation5], 1
    %s751 = scalar_lea.sflag [#allocation5], 1
    %752 = vsyncpa %s751, 1
    %753 = vsyncpa [#allocation6], 1
    %s754 = scalar_lea.sflag [#allocation6], 1
    %755 = vsyncpa %s754, 1

</llo_original>
